<compile_context>
chip_gen: v7x
topology: tpu7x:2x2x1
jax: 0.10.0
libtpu: 0.0.40
codegen_flags: <defaults>
</compile_context>

<pallas_src>
import functools
import math

import jax
import jax.numpy as jnp
from jax.experimental import pallas as pl
from jax.experimental.pallas import tpu as pltpu

_LANE = 128            # lane width  (last dim)
_SUBLANE = 8           # sublane width (second-to-last dim)
_BATCH_TILE = 256      # rows per grid step when the padded batch is large
_MAX_UNROLL_LAYERS = 32  # beyond this, switch to lax.fori_loop (bounded live ranges)


def _round_up(x: int, m: int) -> int:
    return (x + m - 1) // m * m


def _fused_forward_kernel(x_ref, w_ref, b_ref, o_ref, *,
                          layer_in_dims, unroll, use_vpu_fma):
    """Fused n-layer (Linear + Sigmoid) forward.

    x_ref: (Bt, D_pad)        f32, zero-padded input activations (one or more vreg tiles)
    w_ref: (L, D_pad, D_pad)  bf16, layer-l weight W_l^T, zero-padded
    b_ref: (L, 1, D_pad)      f32, zero-padded biases
    o_ref: (Bt, D_pad)        f32 output
    Padded activation lanes may become sigmoid(0)=0.5 between layers; they never leak
    into valid lanes because the corresponding weight ROWS are zero (MXU path) or are
    simply never visited (VPU-FMA path iterates only the valid k indices).
    """
    n_layers = len(layer_in_dims)
    h = x_ref[...]  # activation lives in vregs across all layers; never re-stored

    if unroll:
        for layer in range(n_layers):  # static unroll (n_layers small & compile-time)
            if use_vpu_fma:
                # Tiny contraction dim: 3-4 VPU broadcast-FMAs instead of an MXU pass.
                # Avoids per-layer MXU weight-push + result-FIFO drain latency.
                y = b_ref[layer]                                        # (1, D_pad) f32
                for k in range(layer_in_dims[layer]):
                    w_row = w_ref[layer, k:k + 1, :].astype(jnp.float32)  # (1, D_pad)
                    y = y + h[:, k:k + 1] * w_row                         # lane/sublane bcast
            else:
                # MXU path: bf16 operands, f32 accumulation (bf16-native on v6e/v7x).
                y = jnp.dot(h.astype(w_ref.dtype), w_ref[layer],
                            preferred_element_type=jnp.float32) + b_ref[layer]
            # Exact sigmoid: exp on the EUP + exact divide (only 8x128 elems/layer).
            h = 1.0 / (1.0 + jnp.exp(-y))
    else:
        # Large n_layers: fori_loop keeps instruction count / vreg live ranges bounded.
        def body(layer, h):
            y = jnp.dot(h.astype(w_ref.dtype), w_ref[layer],
                        preferred_element_type=jnp.float32) + b_ref[layer]
            return 1.0 / (1.0 + jnp.exp(-y))
        h = jax.lax.fori_loop(0, n_layers, body, h, unroll=2)

    o_ref[...] = h


def pad_input(x: jax.Array, d_pad: int) -> jax.Array:
    """Zero-pad x to a lane-dense (B_pad, d_pad) f32 buffer.

    Done ONCE by the caller (reusable / donatable across steps) so the pad is not on
    the per-step critical path.  Padding lanes MUST be zero (see kernel docstring).
    """
    batch, in_dim = x.shape
    b_pad = _round_up(max(batch, 1), _SUBLANE)
    if b_pad > _BATCH_TILE:
        b_pad = _round_up(b_pad, _BATCH_TILE)
    return (jnp.zeros((b_pad, d_pad), jnp.float32)
            .at[:batch, :in_dim].set(x.astype(jnp.float32)))


def multi_my_model_forward(x_pad: jax.Array, w_stack: jax.Array, b_stack: jax.Array,
                           *, in_dim: int, out_dim: int) -> jax.Array:
    """Whole MultiMyModel forward as one pallas_call. Returns the PADDED output;
    the consumer slices [:batch, :model_out_dim] lazily."""
    b_pad, d_pad = x_pad.shape
    n_layers = w_stack.shape[0]

    # Contraction dim of layer i (the (in_dim, out_dim) pair swaps every layer).
    layer_in_dims = tuple(in_dim if i % 2 == 0 else out_dim for i in range(n_layers))
    unroll = n_layers <= _MAX_UNROLL_LAYERS
    use_vpu_fma = unroll and max(layer_in_dims) <= _SUBLANE

    kernel = functools.partial(_fused_forward_kernel,
                               layer_in_dims=layer_in_dims,
                               unroll=unroll,
                               use_vpu_fma=use_vpu_fma)
    out_shape = jax.ShapeDtypeStruct((b_pad, d_pad), jnp.float32)

    if b_pad <= _BATCH_TILE:
        # Grid-free: one invocation, everything resident in VMEM, no pipeline prologue.
        return pl.pallas_call(
            kernel,
            out_shape=out_shape,
            in_specs=[
                pl.BlockSpec(memory_space=pltpu.MemorySpace.VMEM),  # activations
                pl.BlockSpec(memory_space=pltpu.MemorySpace.VMEM),  # stacked weights
                pl.BlockSpec(memory_space=pltpu.MemorySpace.VMEM),  # stacked biases
            ],
            out_specs=pl.BlockSpec(memory_space=pltpu.MemorySpace.VMEM),
        )(x_pad, w_stack, b_stack)

    # Large batch: tile the batch (sublane) axis and mark it "parallel" so both v7x
    # TensorCores are used; weights/bias blocks are constant across steps.
    assert b_pad % _BATCH_TILE == 0
    return pl.pallas_call(
        kernel,
        out_shape=out_shape,
        grid_spec=pltpu.PrefetchScalarGridSpec(
            num_scalar_prefetch=0,
            grid=(b_pad // _BATCH_TILE,),
            in_specs=[
                pl.BlockSpec((_BATCH_TILE, d_pad), lambda i: (i, 0)),
                pl.BlockSpec((n_layers, d_pad, d_pad), lambda i: (0, 0, 0)),
                pl.BlockSpec((n_layers, 1, d_pad), lambda i: (0, 0, 0)),
            ],
            out_specs=pl.BlockSpec((_BATCH_TILE, d_pad), lambda i: (i, 0)),
        ),
        compiler_params=pltpu.CompilerParams(dimension_semantics=("parallel",)),
    )(x_pad, w_stack, b_stack)


def init_multi_my_model_params(key, in_dim: int = 3, out_dim: int = 4, n_layers: int = 1):
    """Deterministic init matching MultiMyModel layer shapes.

    Each layer is nn.Linear(in_dim, out_dim) with PyTorch-default
    U(-1/sqrt(fan_in), 1/sqrt(fan_in)) init (generated with JAX PRNG), then the
    (in_dim, out_dim) pair swaps — exactly like MultiMyModel.__init__.

    Returns (w_stack, b_stack, model_out_dim):
      w_stack: (n_layers, D_pad, D_pad) bf16   W_l^T zero-padded, lane-dense slab
      b_stack: (n_layers, 1, D_pad)     f32    zero-padded biases
    """
    d_pad = _round_up(max(in_dim, out_dim), _LANE)
    w_stack = jnp.zeros((n_layers, d_pad, d_pad), jnp.bfloat16)
    b_stack = jnp.zeros((n_layers, 1, d_pad), jnp.float32)

    d_in, d_out = in_dim, out_dim
    for layer in range(n_layers):
        key, kw, kb = jax.random.split(key, 3)
        bound = 1.0 / math.sqrt(d_in)
        w_pt = jax.random.uniform(kw, (d_out, d_in), jnp.float32, -bound, bound)
        b = jax.random.uniform(kb, (d_out,), jnp.float32, -bound, bound)
        w_stack = w_stack.at[layer, :d_in, :d_out].set(w_pt.T.astype(jnp.bfloat16))
        b_stack = b_stack.at[layer, 0, :d_out].set(b)
        d_in, d_out = d_out, d_in  # swap, like MultiMyModel.__init__
    return w_stack, b_stack, d_in  # d_in is now the model's out_dim


if __name__ == "__main__":
    # TODO(synk): weight init uses JAX PRNG, not torch RNG, so values (not semantics)
    # differ from the torchft reference model.
    in_dim, out_dim, n_layers = 3, 4, 2
    batch = 2

    key = jax.random.PRNGKey(0)
    key, kp, kx = jax.random.split(key, 3)
    w_stack, b_stack, model_out_dim = init_multi_my_model_params(
        kp, in_dim, out_dim, n_layers)

    # get_rand_inputs: torch.rand(batch, in_dim) -> uniform [0, 1)
    x = jax.random.uniform(kx, (batch, in_dim), jnp.float32)

    # Pad once, off the critical path (buffer is reusable/donatable across steps).
    x_pad = pad_input(x, d_pad=w_stack.shape[1])

    y_pad = multi_my_model_forward(x_pad, w_stack, b_stack,
                                   in_dim=in_dim, out_dim=out_dim)
    y_pad = jax.block_until_ready(y_pad)
    y = y_pad[:batch, :model_out_dim]   # consumer-side lazy slice

    # Pure-JAX f32 reference of the same semantics (exact sigmoid).  The kernel's
    # VPU-FMA path keeps activations in exact f32 and only the stored weights are
    # bf16 (same values used by the reference), so the tolerance is tight.
    ref = x
    d_in, d_out = in_dim, out_dim
    for layer in range(n_layers):
        w_t = w_stack[layer, :d_in, :d_out].astype(jnp.float32)
        b = b_stack[layer, 0, :d_out]
        ref = 1.0 / (1.0 + jnp.exp(-(ref @ w_t + b)))
        d_in, d_out = d_out, d_in

    assert y.shape == (batch, model_out_dim)
    assert jnp.allclose(y, ref, atol=1e-4, rtol=1e-4), (
        f"max abs diff {jnp.max(jnp.abs(y - ref))}")

    print("KERNEL_OK")
</pallas_src>

<mosaic_0001>
module attributes {stable_mosaic.version = 11 : i64} {
  func.func @_fused_forward_kernel(%arg0: memref<8x128xf32, #tpu.memory_space<vmem>>, %arg1: memref<2x128x128xbf16, #tpu.memory_space<vmem>>, %arg2: memref<2x1x128xf32, #tpu.memory_space<vmem>>, %arg3: memref<8x128xf32, #tpu.memory_space<vmem>>) attributes {dimension_semantics = [], scalar_prefetch = 0 : i64, scratch_operands = 0 : i64, tpu.core_type = #tpu.core_type<tc>} {
    %c0 = arith.constant 0 : index
    %c0_0 = arith.constant 0 : index
    %0 = vector.load %arg0[%c0, %c0_0] : memref<8x128xf32, #tpu.memory_space<vmem>>, vector<8x128xf32>
    %c0_1 = arith.constant 0 : index
    %c0_2 = arith.constant 0 : index
    %c0_3 = arith.constant 0 : index
    %1 = vector.load %arg2[%c0_1, %c0_2, %c0_3] : memref<2x1x128xf32, #tpu.memory_space<vmem>>, vector<1x1x128xf32>
    %2 = vector.shape_cast %1 : vector<1x1x128xf32> to vector<1x128xf32>
    %c0_4 = arith.constant 0 : index
    %c0_5 = arith.constant 0 : index
    %c0_6 = arith.constant 0 : index
    %3 = vector.load %arg1[%c0_4, %c0_5, %c0_6] : memref<2x128x128xbf16, #tpu.memory_space<vmem>>, vector<1x1x128xbf16>
    %4 = vector.shape_cast %3 : vector<1x1x128xbf16> to vector<1x128xbf16>
    %5 = arith.extf %4 : vector<1x128xbf16> to vector<1x128xf32>
    %6 = vector.extract_strided_slice %0 {offsets = [0, 0], sizes = [8, 1], strides = [1, 1]} : vector<8x128xf32> to vector<8x1xf32>
    %7 = vector.broadcast %6 : vector<8x1xf32> to vector<8x128xf32>
    %8 = vector.broadcast %5 : vector<1x128xf32> to vector<8x128xf32>
    %9 = arith.mulf %7, %8 : vector<8x128xf32>
    %10 = vector.broadcast %2 : vector<1x128xf32> to vector<8x128xf32>
    %11 = arith.addf %10, %9 : vector<8x128xf32>
    %c0_7 = arith.constant 0 : index
    %c1 = arith.constant 1 : index
    %c0_8 = arith.constant 0 : index
    %12 = vector.load %arg1[%c0_7, %c1, %c0_8] : memref<2x128x128xbf16, #tpu.memory_space<vmem>>, vector<1x1x128xbf16>
    %13 = vector.shape_cast %12 : vector<1x1x128xbf16> to vector<1x128xbf16>
    %14 = arith.extf %13 : vector<1x128xbf16> to vector<1x128xf32>
    %15 = vector.extract_strided_slice %0 {offsets = [0, 1], sizes = [8, 1], strides = [1, 1]} : vector<8x128xf32> to vector<8x1xf32>
    %16 = vector.broadcast %15 : vector<8x1xf32> to vector<8x128xf32>
    %17 = vector.broadcast %14 : vector<1x128xf32> to vector<8x128xf32>
    %18 = arith.mulf %16, %17 : vector<8x128xf32>
    %19 = arith.addf %11, %18 : vector<8x128xf32>
    %c0_9 = arith.constant 0 : index
    %c2 = arith.constant 2 : index
    %c0_10 = arith.constant 0 : index
    %20 = vector.load %arg1[%c0_9, %c2, %c0_10] : memref<2x128x128xbf16, #tpu.memory_space<vmem>>, vector<1x1x128xbf16>
    %21 = vector.shape_cast %20 : vector<1x1x128xbf16> to vector<1x128xbf16>
    %22 = arith.extf %21 : vector<1x128xbf16> to vector<1x128xf32>
    %23 = vector.extract_strided_slice %0 {offsets = [0, 2], sizes = [8, 1], strides = [1, 1]} : vector<8x128xf32> to vector<8x1xf32>
    %24 = vector.broadcast %23 : vector<8x1xf32> to vector<8x128xf32>
    %25 = vector.broadcast %22 : vector<1x128xf32> to vector<8x128xf32>
    %26 = arith.mulf %24, %25 : vector<8x128xf32>
    %27 = arith.addf %19, %26 : vector<8x128xf32>
    %cst = arith.constant 0.000000e+00 : f32
    %28 = vector.broadcast %cst : f32 to vector<8x128xf32>
    %29 = arith.subf %28, %27 : vector<8x128xf32>
    %30 = math.exp %29 : vector<8x128xf32>
    %cst_11 = arith.constant 1.000000e+00 : f32
    %31 = vector.broadcast %cst_11 : f32 to vector<8x128xf32>
    %32 = arith.addf %31, %30 : vector<8x128xf32>
    %cst_12 = arith.constant 1.000000e+00 : f32
    %33 = vector.broadcast %cst_12 : f32 to vector<8x128xf32>
    %34 = arith.divf %33, %32 : vector<8x128xf32>
    %c1_13 = arith.constant 1 : index
    %c0_14 = arith.constant 0 : index
    %c0_15 = arith.constant 0 : index
    %35 = vector.load %arg2[%c1_13, %c0_14, %c0_15] : memref<2x1x128xf32, #tpu.memory_space<vmem>>, vector<1x1x128xf32>
    %36 = vector.shape_cast %35 : vector<1x1x128xf32> to vector<1x128xf32>
    %c1_16 = arith.constant 1 : index
    %c0_17 = arith.constant 0 : index
    %c0_18 = arith.constant 0 : index
    %37 = vector.load %arg1[%c1_16, %c0_17, %c0_18] : memref<2x128x128xbf16, #tpu.memory_space<vmem>>, vector<1x1x128xbf16>
    %38 = vector.shape_cast %37 : vector<1x1x128xbf16> to vector<1x128xbf16>
    %39 = arith.extf %38 : vector<1x128xbf16> to vector<1x128xf32>
    %40 = vector.extract_strided_slice %34 {offsets = [0, 0], sizes = [8, 1], strides = [1, 1]} : vector<8x128xf32> to vector<8x1xf32>
    %41 = vector.broadcast %40 : vector<8x1xf32> to vector<8x128xf32>
    %42 = vector.broadcast %39 : vector<1x128xf32> to vector<8x128xf32>
    %43 = arith.mulf %41, %42 : vector<8x128xf32>
    %44 = vector.broadcast %36 : vector<1x128xf32> to vector<8x128xf32>
    %45 = arith.addf %44, %43 : vector<8x128xf32>
    %c1_19 = arith.constant 1 : index
    %c1_20 = arith.constant 1 : index
    %c0_21 = arith.constant 0 : index
    %46 = vector.load %arg1[%c1_19, %c1_20, %c0_21] : memref<2x128x128xbf16, #tpu.memory_space<vmem>>, vector<1x1x128xbf16>
    %47 = vector.shape_cast %46 : vector<1x1x128xbf16> to vector<1x128xbf16>
    %48 = arith.extf %47 : vector<1x128xbf16> to vector<1x128xf32>
    %49 = vector.extract_strided_slice %34 {offsets = [0, 1], sizes = [8, 1], strides = [1, 1]} : vector<8x128xf32> to vector<8x1xf32>
    %50 = vector.broadcast %49 : vector<8x1xf32> to vector<8x128xf32>
    %51 = vector.broadcast %48 : vector<1x128xf32> to vector<8x128xf32>
    %52 = arith.mulf %50, %51 : vector<8x128xf32>
    %53 = arith.addf %45, %52 : vector<8x128xf32>
    %c1_22 = arith.constant 1 : index
    %c2_23 = arith.constant 2 : index
    %c0_24 = arith.constant 0 : index
    %54 = vector.load %arg1[%c1_22, %c2_23, %c0_24] : memref<2x128x128xbf16, #tpu.memory_space<vmem>>, vector<1x1x128xbf16>
    %55 = vector.shape_cast %54 : vector<1x1x128xbf16> to vector<1x128xbf16>
    %56 = arith.extf %55 : vector<1x128xbf16> to vector<1x128xf32>
    %57 = vector.extract_strided_slice %34 {offsets = [0, 2], sizes = [8, 1], strides = [1, 1]} : vector<8x128xf32> to vector<8x1xf32>
    %58 = vector.broadcast %57 : vector<8x1xf32> to vector<8x128xf32>
    %59 = vector.broadcast %56 : vector<1x128xf32> to vector<8x128xf32>
    %60 = arith.mulf %58, %59 : vector<8x128xf32>
    %61 = arith.addf %53, %60 : vector<8x128xf32>
    %c1_25 = arith.constant 1 : index
    %c3 = arith.constant 3 : index
    %c0_26 = arith.constant 0 : index
    %62 = vector.load %arg1[%c1_25, %c3, %c0_26] : memref<2x128x128xbf16, #tpu.memory_space<vmem>>, vector<1x1x128xbf16>
    %63 = vector.shape_cast %62 : vector<1x1x128xbf16> to vector<1x128xbf16>
    %64 = arith.extf %63 : vector<1x128xbf16> to vector<1x128xf32>
    %65 = vector.extract_strided_slice %34 {offsets = [0, 3], sizes = [8, 1], strides = [1, 1]} : vector<8x128xf32> to vector<8x1xf32>
    %66 = vector.broadcast %65 : vector<8x1xf32> to vector<8x128xf32>
    %67 = vector.broadcast %64 : vector<1x128xf32> to vector<8x128xf32>
    %68 = arith.mulf %66, %67 : vector<8x128xf32>
    %69 = arith.addf %61, %68 : vector<8x128xf32>
    %cst_27 = arith.constant 0.000000e+00 : f32
    %70 = vector.broadcast %cst_27 : f32 to vector<8x128xf32>
    %71 = arith.subf %70, %69 : vector<8x128xf32>
    %72 = math.exp %71 : vector<8x128xf32>
    %cst_28 = arith.constant 1.000000e+00 : f32
    %73 = vector.broadcast %cst_28 : f32 to vector<8x128xf32>
    %74 = arith.addf %73, %72 : vector<8x128xf32>
    %cst_29 = arith.constant 1.000000e+00 : f32
    %75 = vector.broadcast %cst_29 : f32 to vector<8x128xf32>
    %76 = arith.divf %75, %74 : vector<8x128xf32>
    %c0_30 = arith.constant 0 : index
    %c0_31 = arith.constant 0 : index
    %77 = vector.load %arg3[%c0_30, %c0_31] : memref<8x128xf32, #tpu.memory_space<vmem>>, vector<8x128xf32>
    tpu.vector_store %arg3[%c0_30, %c0_31], %76 {strides = array<i32>} : memref<8x128xf32, #tpu.memory_space<vmem>>, vector<8x128xf32>,
    return
  }
}

</mosaic_0001>

<llo_original>
// kernel: tpu_custom_call.1
$region0: #{tpu_custom_call.1}
  #allocation0 [shape = 'u32[]', space=smem, size = 0x4, offset = 0x4, fixed_abs, tag = 'smem constant byte address 0x4 - core index']
  #allocation1 [shape = 'u32[144,128]{1,0:T(1,128)}', space=vmem, size = 0x12000, scoped, tag = 'internal scratch']
  %s0 = inlined_call_operand.hbm [shape: f32[8,128], index: 0, kind: input, shape index: {}]
  %s1 = inlined_call_operand.hbm [shape: bf16[2,128,128], index: 1, kind: input, shape index: {}]
  %s2 = inlined_call_operand.vmem [shape: f32[2,1,128], index: 2, kind: input, shape index: {}]
  %s3 = inlined_call_operand.hbm [shape: f32[8,128], index: 3, kind: output, shape index: {}]
  %s4 = sld [smem:[#allocation0]]
  $region30: #{tpu_custom_call.1} parent=0
    _
  %s6 = ssub.s32 1, %s4
  %s7 = scalar_select 0, %s6, %s4
  $region1: #{tpu_custom_call.1} parent=0
    #allocation2 [shape = 'u8[4096]{0}', space=vmem, size = 0x1000, scoped, tag = 'input window, operand 0, single buffered']
    #allocation3 [shape = 's32[1]{0}', space=sflag, size = 0x4, scoped, tag = 'scoped memory for tpu_custom_call.1']
    #allocation4 [shape = 's32[1]{0}', space=sflag, size = 0x4, scoped, tag = 'scoped memory for tpu_custom_call.1']
    #allocation5 [shape = 'u8[65536]{0}', space=vmem, size = 0x10000, scoped, tag = 'input window, operand 1, single buffered']
    #allocation6 [shape = 's32[1]{0}', space=sflag, size = 0x4, scoped, tag = 'scoped memory for tpu_custom_call.1']
    #allocation7 [shape = 'u8[4096]{0}', space=vmem, size = 0x1000, scoped, tag = 'output window, operand 0, single buffered']
    %8 = vsyncpa [#allocation3], 0
    %9 = vsyncpa [#allocation6], 0
    %10 = vsyncpa [#allocation4], 0
    // Predicated region
    $region2: #{tpu_custom_call.1} parent=1 // pred_check
      _
    $region3: #{tpu_custom_call.1} parent=1 // pred_check_branch
      %12 = sbr.rel (0) target = $region5
    $region4: #{tpu_custom_call.1} parent=1 // pred_region
      %s14 = ssub.s32 128, 128
      %15 = vsyncadd [#allocation3], %s14
      %s17 = sshll.u32 [#allocation2], 4
      %s18 = int_to_ptr.vmem [resolvable:$true] %s17
      %20 = dma.hbm_to_vmem [thread:$0]  %s0, 128, %s18, [#allocation3]
    $region5: #{tpu_custom_call.1} parent=1 // pred_fallthru
      _
    // Predicated region
    $region6: #{tpu_custom_call.1} parent=1 // pred_check
      _
    $region7: #{tpu_custom_call.1} parent=1 // pred_check_branch
      %22 = sbr.rel (0) target = $region9
    $region8: #{tpu_custom_call.1} parent=1 // pred_region
      %s24 = ssub.s32 2048, 2048
      %25 = vsyncadd [#allocation6], %s24
      %s26 = sshll.u32 [#allocation5], 4
      %s27 = int_to_ptr.vmem [resolvable:$true] %s26
      %32 = dma.hbm_to_vmem [thread:$0]  %s1, 2048, %s27, [#allocation6], 64, 64, 4
    $region9: #{tpu_custom_call.1} parent=1 // pred_fallthru
      _
    // Predicated region
    $region10: #{tpu_custom_call.1} parent=1 // pred_check
      _
    $region11: #{tpu_custom_call.1} parent=1 // pred_check_branch
      %34 = sbr.rel (0) target = $region13
    $region12: #{tpu_custom_call.1} parent=1 // pred_region
      _
    $region13: #{tpu_custom_call.1} parent=1 // pred_fallthru
      _
    // Predicated region
    $region14: #{tpu_custom_call.1} parent=1 // pred_check
      _
    $region15: #{tpu_custom_call.1} parent=1 // pred_check_branch
      %36 = sbr.rel (0) target = $region17
    $region16: #{tpu_custom_call.1} parent=1 // pred_region
      %37 = dma.done [#allocation3], 128
    $region17: #{tpu_custom_call.1} parent=1 // pred_fallthru
      _
    // Predicated region
    $region18: #{tpu_custom_call.1} parent=1 // pred_check
      _
    $region19: #{tpu_custom_call.1} parent=1 // pred_check_branch
      %39 = sbr.rel (0) target = $region21
    $region20: #{tpu_custom_call.1} parent=1 // pred_region
      %40 = dma.done [#allocation6], 2048
    $region21: #{tpu_custom_call.1} parent=1 // pred_fallthru
      _
    %v41 = vld [vmem:[#allocation2] sm:$0xff]
    %v42 = vld [vmem:[%s2] sm:$0x1]
    %v43 = vld [vmem:[#allocation5] sm:$0x1]
    %v44 = vunpack.c.l.bf16 %v43
    %46 = vset.pattern.permute.xlu0 0
    %47 = vperm.xlu0 %46, %v41
    %v48 = vpop.permute.xlu0 %47
    %v50 = vlaneseq
    %v51 = vshrl.u32 %v50, 7
    %v52 = vsub.s32 0, %v51
    %v53 = vrot.slane %v44, %v52
    %v54 = vmul.f32 %v48, %v53
    %v56 = vlaneseq
    %v57 = vshrl.u32 %v56, 7
    %v58 = vsub.s32 0, %v57
    %v59 = vrot.slane %v42, %v58
    %v61 = vadd.f32 %v59, %v54
    %62 = vset.pattern.permute.xlu0 1
    %63 = vperm.xlu0 %62, %v41
    %v64 = vpop.permute.xlu0 %63
    %v66 = vlaneseq
    %v67 = vshrl.u32 %v66, 7
    %v68 = vsub.s32 1, %v67
    %v69 = vrot.slane %v44, %v68
    %v70 = vmul.f32 %v64, %v69
    %v71 = vadd.f32 %v61, %v70
    %v72 = vld [vmem:[#allocation5] sm:$0x2]
    %v73 = vunpack.c.l.bf16 %v72
    %74 = vset.pattern.permute.xlu0 2
    %75 = vperm.xlu0 %74, %v41
    %v76 = vpop.permute.xlu0 %75
    %v78 = vlaneseq
    %v79 = vshrl.u32 %v78, 7
    %v80 = vsub.s32 2, %v79
    %v81 = vrot.slane %v73, %v80
    %v82 = vmul.f32 %v76, %v81
    %v83 = vadd.f32 %v71, %v82
    %v84 = vsub.f32 0.0, %v83
    %v85 = vmul.f32 %v84, 1.442695
    %v86 = vpow.pop %v85
    %v87 = vadd.f32 %v86, 1.0
    %v88 = vrcp.pop %v87
    %v89 = vmul.f32 1.0, %v88
    %s90 = scalar_lea.vmem %s2, 1
    %v91 = vld [vmem:[%s90] sm:$0x1]
    %s92 = scalar_lea.vmem [#allocation5], 64
    %v93 = vld [vmem:[%s92] sm:$0x1]
    %v94 = vunpack.c.l.bf16 %v93
    %96 = vset.pattern.permute.xlu0 0
    %97 = vperm.xlu0 %96, %v89
    %v98 = vpop.permute.xlu0 %97
    %v100 = vlaneseq
    %v101 = vshrl.u32 %v100, 7
    %v102 = vsub.s32 0, %v101
    %v103 = vrot.slane %v94, %v102
    %v104 = vmul.f32 %v98, %v103
    %v106 = vlaneseq
    %v107 = vshrl.u32 %v106, 7
    %v108 = vsub.s32 0, %v107
    %v109 = vrot.slane %v91, %v108
    %v111 = vadd.f32 %v109, %v104
    %112 = vset.pattern.permute.xlu0 1
    %113 = vperm.xlu0 %112, %v89
    %v114 = vpop.permute.xlu0 %113
    %v116 = vlaneseq
    %v117 = vshrl.u32 %v116, 7
    %v118 = vsub.s32 1, %v117
    %v119 = vrot.slane %v94, %v118
    %v120 = vmul.f32 %v114, %v119
    %v121 = vadd.f32 %v111, %v120
    %v122 = vld [vmem:[%s92] sm:$0x2]
    %v123 = vunpack.c.l.bf16 %v122
    %124 = vset.pattern.permute.xlu0 2
    %125 = vperm.xlu0 %124, %v89
    %v126 = vpop.permute.xlu0 %125
    %v128 = vlaneseq
    %v129 = vshrl.u32 %v128, 7
    %v130 = vsub.s32 2, %v129
    %v131 = vrot.slane %v123, %v130
    %v132 = vmul.f32 %v126, %v131
    %v133 = vadd.f32 %v121, %v132
    %134 = vset.pattern.permute.xlu0 3
    %135 = vperm.xlu0 %134, %v89
    %v136 = vpop.permute.xlu0 %135
    %v138 = vlaneseq
    %v139 = vshrl.u32 %v138, 7
    %v140 = vsub.s32 3, %v139
    %v141 = vrot.slane %v123, %v140
    %v142 = vmul.f32 %v136, %v141
    %v143 = vadd.f32 %v133, %v142
    %v144 = vsub.f32 0.0, %v143
    %v145 = vmul.f32 %v144, 1.442695
    %v146 = vpow.pop %v145
    %v147 = vadd.f32 %v146, 1.0
    %v148 = vrcp.pop %v147
    %v149 = vmul.f32 1.0, %v148
    %150 = vst [vmem:[#allocation7] sm:$0xff] %v149
    // Predicated region
    $region22: #{tpu_custom_call.1} parent=1 // pred_check
      _
    $region23: #{tpu_custom_call.1} parent=1 // pred_check_branch
      %152 = sbr.rel (0) target = $region25
    $region24: #{tpu_custom_call.1} parent=1 // pred_region
      %s154 = ssub.s32 128, 128
      %155 = vsyncadd [#allocation4], %s154
      %s157 = sshll.u32 [#allocation7], 4
      %s158 = int_to_ptr.vmem [resolvable:$true] %s157
      %160 = dma.vmem_to_hbm [thread:$0]  %s158, 128, %s3, [#allocation4]
    $region25: #{tpu_custom_call.1} parent=1 // pred_fallthru
      _
    // Predicated region
    $region26: #{tpu_custom_call.1} parent=1 // pred_check
      _
    $region27: #{tpu_custom_call.1} parent=1 // pred_check_branch
      %162 = sbr.rel (0) target = $region29
    $region28: #{tpu_custom_call.1} parent=1 // pred_region
      %163 = dma.done [#allocation4], 128
    $region29: #{tpu_custom_call.1} parent=1 // pred_fallthru
      _
    %164 = vsyncpa [#allocation3], 1
    %165 = vsyncpa [#allocation6], 1
    %166 = vsyncpa [#allocation4], 1

</llo_original>
